<compile_context>
chip_gen: v7x
topology: tpu7x:2x2x1
jax: 0.10.0
libtpu: 0.0.40
codegen_flags: <defaults>
</compile_context>

<pallas_src>
import functools

import jax
import jax.numpy as jnp
from jax import lax
from jax.experimental import pallas as pl
from jax.experimental.pallas import tpu as pltpu

_LANE = 128
_SUBLANE = 8


def _round_up(x, m):
    return (x + m - 1) // m * m


# ----------------------------------------------------------------------------
# Mosaic-safe arccos (mul/add/sqrt/abs/select only)
# ----------------------------------------------------------------------------
def _acos(x):
    """float32 arccos for x in [-1, 1] (NaN passes through).

    Cephes-style: minimax asin polynomial on [0, 0.5] plus the half-angle
    identity acos(y) = 2*asin(sqrt((1-y)/2)) for |y| > 0.5.  |error| ~ 1e-7.
    """
    ax = jnp.abs(x)
    big = ax > 0.5
    z_big = 0.5 * (1.0 - ax)                 # in [0, 0.25] on the big branch
    s_big = jnp.sqrt(z_big)
    z = jnp.where(big, z_big, ax * ax)       # s^2 in both branches
    s = jnp.where(big, s_big, ax)            # |s| <= 0.5 in both branches
    p = ((((4.2163199048e-2 * z + 2.4181311049e-2) * z + 4.5470025998e-2) * z
          + 7.4953002686e-2) * z + 1.6666752422e-1)
    asin_s = s + s * z * p                   # asin(s)
    acos_abs = jnp.where(big, 2.0 * asin_s, jnp.float32(jnp.pi / 2) - asin_s)
    return jnp.where(x < 0.0, jnp.float32(jnp.pi) - acos_abs, acos_abs)


# ----------------------------------------------------------------------------
# Pallas kernel
# ----------------------------------------------------------------------------
def _sam_kernel(p_ref, t_ref, acc_ref, *, hw, tile_n):
    """One (batch, pixel-tile) grid step.

    p_ref / t_ref : (C, TILE_N) native-dtype block — channels on sublanes,
                    pixels on lanes.
    acc_ref       : (1, TILE_N) f32 per-lane angle accumulator, resident in
                    VMEM across the pixel-tile (reduction) grid axis.
    """
    j = pl.program_id(1)

    @pl.when(j == 0)
    def _init():
        acc_ref[...] = jnp.zeros_like(acc_ref)

    p = p_ref[...].astype(jnp.float32)
    t = t_ref[...].astype(jnp.float32)

    dot = jnp.sum(p * t, axis=0, keepdims=True)        # (1, TILE_N) sublane reduce
    pn2 = jnp.sum(p * p, axis=0, keepdims=True)
    tn2 = jnp.sum(t * t, axis=0, keepdims=True)

    # Same formula as the reference (no epsilon): zero-norm pixels -> NaN,
    # matching PyTorch.
    cos = jnp.clip(dot / (jnp.sqrt(pn2) * jnp.sqrt(tn2)), -1.0, 1.0)
    ang = _acos(cos)

    # Mask the ragged tail of the last pixel tile: garbage lanes from the
    # partial input block must never reach the accumulator.
    col = j * tile_n + lax.broadcasted_iota(jnp.int32, (1, tile_n), 1)
    ang = jnp.where(col < hw, ang, 0.0)

    acc_ref[...] += ang


# ----------------------------------------------------------------------------
# Wrapper
# ----------------------------------------------------------------------------
@functools.partial(jax.jit, static_argnames=("max_tile_n", "target_block_bytes"))
def sam_loss(preds, target, *, max_tile_n=16384, target_block_bytes=2 << 20):
    assert preds.shape == target.shape and preds.ndim >= 2
    B, C = preds.shape[0], preds.shape[1]
    hw = 1
    for d in preds.shape[2:]:
        hw *= d

    # Free reshapes only — keep the native HBM layout and dtype.
    p = preds.reshape(B, C, hw)
    t = target.reshape(B, C, hw)

    itemsize = jnp.dtype(p.dtype).itemsize
    c_pad = _round_up(C, _SUBLANE)

    # Pixel (lane) tile size: aim for ~target_block_bytes of f32 working set
    # per input block so each grid step amortizes the fixed pipeline overhead.
    tile_n = target_block_bytes // (c_pad * 4)
    tile_n = max(_LANE, min(max_tile_n, (tile_n // _LANE) * _LANE))
    tile_n = min(tile_n, _round_up(hw, _LANE))
    grid = (B, pl.cdiv(hw, tile_n))

    # Rough VMEM budget: 2 inputs x 2 pipeline buffers (native dtype) plus f32
    # working copies / temporaries, plus the small accumulator.  Clamp to a
    # range that is safe on v5e/v6e (128 MiB) and v7x (64 MiB per core).
    block_bytes = c_pad * tile_n * itemsize
    est = 2 * 2 * block_bytes + 8 * c_pad * tile_n * 4 + 8 * tile_n * 4
    vmem_limit = int(min(max(est, 16 << 20), 48 << 20))

    kernel = functools.partial(_sam_kernel, hw=hw, tile_n=tile_n)

    acc = pl.pallas_call(
        kernel,
        out_shape=jax.ShapeDtypeStruct((B, 1, tile_n), jnp.float32),
        grid=grid,
        in_specs=[
            pl.BlockSpec((None, C, tile_n), lambda b, j: (b, 0, j)),
            pl.BlockSpec((None, C, tile_n), lambda b, j: (b, 0, j)),
        ],
        out_specs=pl.BlockSpec((None, 1, tile_n), lambda b, j: (b, 0, 0)),
        compiler_params=pltpu.CompilerParams(
            dimension_semantics=("parallel", "arbitrary"),
            vmem_limit_bytes=vmem_limit,
        ),
    )(p, t)

    # Tiny epilogue: sum B * TILE_N per-lane partial sums, divide by pixel count.
    return jnp.sum(acc) / (B * hw)


# ----------------------------------------------------------------------------
# Pure-JAX reference (mirrors the PyTorch module)
# ----------------------------------------------------------------------------
def sam_loss_ref(preds, target):
    preds = preds.astype(jnp.float32)
    target = target.astype(jnp.float32)
    dot = jnp.sum(preds * target, axis=1)
    pn = jnp.sqrt(jnp.sum(preds * preds, axis=1))
    tn = jnp.sqrt(jnp.sum(target * target, axis=1))
    cos = jnp.clip(dot / (pn * tn), -1.0, 1.0)
    return jnp.mean(jnp.arccos(cos))


# ----------------------------------------------------------------------------
# main
# ----------------------------------------------------------------------------
if __name__ == "__main__":
    import numpy as np

    key = jax.random.PRNGKey(0)
    k1, k2, k3, k4 = jax.random.split(key, 4)

    # Hyperspectral-style input: 31 bands, 32x32 spatial.
    B, C, H, W = 2, 31, 32, 32
    preds = jax.random.uniform(k1, (B, C, H, W), jnp.float32, 0.05, 1.0)
    target = jax.random.uniform(k2, (B, C, H, W), jnp.float32, 0.05, 1.0)

    out = jax.block_until_ready(sam_loss(preds, target))
    ref = sam_loss_ref(preds, target)
    assert np.allclose(np.asarray(out), np.asarray(ref), rtol=1e-4, atol=1e-5), (
        float(out), float(ref))

    # Few channels, pixel count not a multiple of 128: exercises the ragged
    # tail (partial block + in-kernel lane mask) with no host-side padding.
    B2, C2, H2, W2 = 2, 4, 9, 13
    preds2 = jax.random.uniform(k3, (B2, C2, H2, W2), jnp.float32, 0.05, 1.0)
    target2 = jax.random.uniform(k4, (B2, C2, H2, W2), jnp.float32, 0.05, 1.0)

    out2 = jax.block_until_ready(sam_loss(preds2, target2))
    ref2 = sam_loss_ref(preds2, target2)
    assert np.allclose(np.asarray(out2), np.asarray(ref2), rtol=1e-4, atol=1e-5), (
        float(out2), float(ref2))

    # bf16 inputs stay bf16 in HBM (halved read traffic); the f32 upcast
    # happens inside the kernel.
    preds3 = preds.astype(jnp.bfloat16)
    target3 = target.astype(jnp.bfloat16)
    out3 = jax.block_until_ready(sam_loss(preds3, target3))
    ref3 = sam_loss_ref(preds3, target3)
    assert np.allclose(np.asarray(out3), np.asarray(ref3), rtol=1e-3, atol=1e-4), (
        float(out3), float(ref3))

    print("KERNEL_OK")
</pallas_src>

<mosaic_0001>
module attributes {stable_mosaic.version = 11 : i64} {
  func.func @_sam_kernel(%arg0: i32, %arg1: i32, %arg2: memref<1x31x1024xf32, #tpu.memory_space<vmem>>, %arg3: memref<1x31x1024xf32, #tpu.memory_space<vmem>>, %arg4: memref<1x1x1024xf32, #tpu.memory_space<vmem>>) attributes {dimension_semantics = [#tpu.dimension_semantics<parallel>, #tpu.dimension_semantics<arbitrary>], iteration_bounds = array<i64: 2, 1>, scalar_prefetch = 0 : i64, scratch_operands = 0 : i64, tpu.core_type = #tpu.core_type<tc>, window_params = [{transform_indices = @transform_0, window_bounds = array<i64: 1, 31, 1024>}, {transform_indices = @transform_1, window_bounds = array<i64: 1, 31, 1024>}, {transform_indices = @transform_2, window_bounds = array<i64: 1, 1, 1024>}]} {
    %c0_i32 = arith.constant 0 : i32
    %0 = arith.cmpi eq, %arg1, %c0_i32 : i32
    %1 = arith.extui %0 : i1 to i32
    %c0_i32_0 = arith.constant 0 : i32
    %2 = arith.cmpi ne, %1, %c0_i32_0 : i32
    scf.if %2 {
      %cst_30 = arith.constant 0.000000e+00 : f32
      %75 = vector.broadcast %cst_30 : f32 to vector<1x1024xf32>
      %c0_31 = arith.constant 0 : index
      %c0_32 = arith.constant 0 : index
      %c0_33 = arith.constant 0 : index
      %76 = vector.load %arg4[%c0_31, %c0_32, %c0_33] : memref<1x1x1024xf32, #tpu.memory_space<vmem>>, vector<1x1x1024xf32>
      %77 = vector.shape_cast %76 : vector<1x1x1024xf32> to vector<1x1024xf32>
      %78 = vector.shape_cast %75 : vector<1x1024xf32> to vector<1x1x1024xf32>
      tpu.vector_store %arg4[%c0_31, %c0_32, %c0_33], %78 {strides = array<i32>} : memref<1x1x1024xf32, #tpu.memory_space<vmem>>, vector<1x1x1024xf32>,
    } else {
    }
    %c0 = arith.constant 0 : index
    %c0_1 = arith.constant 0 : index
    %c0_2 = arith.constant 0 : index
    %3 = vector.load %arg2[%c0, %c0_1, %c0_2] : memref<1x31x1024xf32, #tpu.memory_space<vmem>>, vector<1x31x1024xf32>
    %4 = vector.shape_cast %3 : vector<1x31x1024xf32> to vector<31x1024xf32>
    %c0_3 = arith.constant 0 : index
    %c0_4 = arith.constant 0 : index
    %c0_5 = arith.constant 0 : index
    %5 = vector.load %arg3[%c0_3, %c0_4, %c0_5] : memref<1x31x1024xf32, #tpu.memory_space<vmem>>, vector<1x31x1024xf32>
    %6 = vector.shape_cast %5 : vector<1x31x1024xf32> to vector<31x1024xf32>
    %7 = arith.mulf %4, %6 : vector<31x1024xf32>
    %cst = arith.constant dense<0.000000e+00> : vector<1024xf32>
    %8 = vector.multi_reduction <add>, %7, %cst [0] : vector<31x1024xf32> to vector<1024xf32>
    %9 = vector.shape_cast %8 : vector<1024xf32> to vector<1x1024xf32>
    %10 = arith.mulf %4, %4 : vector<31x1024xf32>
    %cst_6 = arith.constant dense<0.000000e+00> : vector<1024xf32>
    %11 = vector.multi_reduction <add>, %10, %cst_6 [0] : vector<31x1024xf32> to vector<1024xf32>
    %12 = vector.shape_cast %11 : vector<1024xf32> to vector<1x1024xf32>
    %13 = arith.mulf %6, %6 : vector<31x1024xf32>
    %cst_7 = arith.constant dense<0.000000e+00> : vector<1024xf32>
    %14 = vector.multi_reduction <add>, %13, %cst_7 [0] : vector<31x1024xf32> to vector<1024xf32>
    %15 = vector.shape_cast %14 : vector<1024xf32> to vector<1x1024xf32>
    %16 = math.sqrt %12 : vector<1x1024xf32>
    %17 = math.sqrt %15 : vector<1x1024xf32>
    %18 = arith.mulf %16, %17 : vector<1x1024xf32>
    %19 = arith.divf %9, %18 : vector<1x1024xf32>
    %cst_8 = arith.constant -1.000000e+00 : f32
    %cst_9 = arith.constant 1.000000e+00 : f32
    %20 = vector.broadcast %cst_8 : f32 to vector<1x1024xf32>
    %21 = arith.maximumf %20, %19 : vector<1x1024xf32>
    %22 = vector.broadcast %cst_9 : f32 to vector<1x1024xf32>
    %23 = arith.minimumf %22, %21 : vector<1x1024xf32>
    %24 = math.absf %23 : vector<1x1024xf32>
    %cst_10 = arith.constant 5.000000e-01 : f32
    %25 = vector.broadcast %cst_10 : f32 to vector<1x1024xf32>
    %26 = arith.cmpf ogt, %24, %25 : vector<1x1024xf32>
    %cst_11 = arith.constant 1.000000e+00 : f32
    %27 = vector.broadcast %cst_11 : f32 to vector<1x1024xf32>
    %28 = arith.subf %27, %24 : vector<1x1024xf32>
    %cst_12 = arith.constant 5.000000e-01 : f32
    %29 = vector.broadcast %cst_12 : f32 to vector<1x1024xf32>
    %30 = arith.mulf %29, %28 : vector<1x1024xf32>
    %31 = math.sqrt %30 : vector<1x1024xf32>
    %32 = arith.mulf %24, %24 : vector<1x1024xf32>
    %33 = arith.select %26, %30, %32 : vector<1x1024xi1>, vector<1x1024xf32>
    %34 = arith.select %26, %31, %24 : vector<1x1024xi1>, vector<1x1024xf32>
    %cst_13 = arith.constant 4.216320e-02 : f32
    %35 = vector.broadcast %cst_13 : f32 to vector<1x1024xf32>
    %36 = arith.mulf %35, %33 : vector<1x1024xf32>
    %cst_14 = arith.constant 0.024181312 : f32
    %37 = vector.broadcast %cst_14 : f32 to vector<1x1024xf32>
    %38 = arith.addf %36, %37 : vector<1x1024xf32>
    %39 = arith.mulf %38, %33 : vector<1x1024xf32>
    %cst_15 = arith.constant 0.0454700254 : f32
    %40 = vector.broadcast %cst_15 : f32 to vector<1x1024xf32>
    %41 = arith.addf %39, %40 : vector<1x1024xf32>
    %42 = arith.mulf %41, %33 : vector<1x1024xf32>
    %cst_16 = arith.constant 0.0749530047 : f32
    %43 = vector.broadcast %cst_16 : f32 to vector<1x1024xf32>
    %44 = arith.addf %42, %43 : vector<1x1024xf32>
    %45 = arith.mulf %44, %33 : vector<1x1024xf32>
    %cst_17 = arith.constant 0.166667521 : f32
    %46 = vector.broadcast %cst_17 : f32 to vector<1x1024xf32>
    %47 = arith.addf %45, %46 : vector<1x1024xf32>
    %48 = arith.mulf %34, %33 : vector<1x1024xf32>
    %49 = arith.mulf %48, %47 : vector<1x1024xf32>
    %50 = arith.addf %34, %49 : vector<1x1024xf32>
    %cst_18 = arith.constant 2.000000e+00 : f32
    %51 = vector.broadcast %cst_18 : f32 to vector<1x1024xf32>
    %52 = arith.mulf %51, %50 : vector<1x1024xf32>
    %cst_19 = arith.constant 1.57079637 : f32
    %53 = vector.broadcast %cst_19 : f32 to vector<1x1024xf32>
    %54 = arith.subf %53, %50 : vector<1x1024xf32>
    %55 = arith.select %26, %52, %54 : vector<1x1024xi1>, vector<1x1024xf32>
    %cst_20 = arith.constant 0.000000e+00 : f32
    %56 = vector.broadcast %cst_20 : f32 to vector<1x1024xf32>
    %57 = arith.cmpf olt, %23, %56 : vector<1x1024xf32>
    %cst_21 = arith.constant 3.14159274 : f32
    %58 = vector.broadcast %cst_21 : f32 to vector<1x1024xf32>
    %59 = arith.subf %58, %55 : vector<1x1024xf32>
    %60 = arith.select %57, %59, %55 : vector<1x1024xi1>, vector<1x1024xf32>
    %c1024_i32 = arith.constant 1024 : i32
    %61 = arith.muli %arg1, %c1024_i32 : i32
    %62 = tpu.iota {dimensions = array<i32: 1>} : vector<1x1024xi32>
    %63 = vector.broadcast %61 : i32 to vector<1x1024xi32>
    %64 = arith.addi %63, %62 : vector<1x1024xi32>
    %c1024_i32_22 = arith.constant 1024 : i32
    %65 = vector.broadcast %c1024_i32_22 : i32 to vector<1x1024xi32>
    %66 = arith.cmpi slt, %64, %65 : vector<1x1024xi32>
    %cst_23 = arith.constant 0.000000e+00 : f32
    %67 = vector.broadcast %cst_23 : f32 to vector<1x1024xf32>
    %68 = arith.select %66, %60, %67 : vector<1x1024xi1>, vector<1x1024xf32>
    %c0_24 = arith.constant 0 : index
    %c0_25 = arith.constant 0 : index
    %c0_26 = arith.constant 0 : index
    %69 = vector.load %arg4[%c0_24, %c0_25, %c0_26] : memref<1x1x1024xf32, #tpu.memory_space<vmem>>, vector<1x1x1024xf32>
    %70 = vector.shape_cast %69 : vector<1x1x1024xf32> to vector<1x1024xf32>
    %71 = arith.addf %70, %68 : vector<1x1024xf32>
    %c0_27 = arith.constant 0 : index
    %c0_28 = arith.constant 0 : index
    %c0_29 = arith.constant 0 : index
    %72 = vector.load %arg4[%c0_27, %c0_28, %c0_29] : memref<1x1x1024xf32, #tpu.memory_space<vmem>>, vector<1x1x1024xf32>
    %73 = vector.shape_cast %72 : vector<1x1x1024xf32> to vector<1x1024xf32>
    %74 = vector.shape_cast %71 : vector<1x1024xf32> to vector<1x1x1024xf32>
    tpu.vector_store %arg4[%c0_27, %c0_28, %c0_29], %74 {strides = array<i32>} : memref<1x1x1024xf32, #tpu.memory_space<vmem>>, vector<1x1x1024xf32>,
    return
  }
  func.func @transform_0(%arg0: i32, %arg1: i32) -> (i32, i32, i32) {
    %c0_i32 = arith.constant 0 : i32
    %c0_i32_0 = arith.constant 0 : i32
    return %arg0, %c0_i32, %arg1 : i32, i32, i32
  }
  func.func @transform_1(%arg0: i32, %arg1: i32) -> (i32, i32, i32) {
    %c0_i32 = arith.constant 0 : i32
    %c0_i32_0 = arith.constant 0 : i32
    return %arg0, %c0_i32, %arg1 : i32, i32, i32
  }
  func.func @transform_2(%arg0: i32, %arg1: i32) -> (i32, i32, i32) {
    %c0_i32 = arith.constant 0 : i32
    %c0_i32_0 = arith.constant 0 : i32
    %c0_i32_1 = arith.constant 0 : i32
    return %arg0, %c0_i32, %c0_i32_0 : i32, i32, i32
  }
}

</mosaic_0001>

<llo_original>
// kernel: sam_loss.1
$region0: #{sam_loss.1}
  #allocation0 [shape = 'u32[]', space=smem, size = 0x4, offset = 0x4, fixed_abs, tag = 'smem constant byte address 0x4 - core index']
  #allocation1 [shape = 'u32[144,128]{1,0:T(1,128)}', space=vmem, size = 0x12000, scoped, tag = 'internal scratch']
  %s0 = inlined_call_operand.vmem [shape: f32[2,31,1024], index: 0, kind: input, shape index: {}]
  %s1 = inlined_call_operand.vmem [shape: f32[2,31,1024], index: 1, kind: input, shape index: {}]
  %s2 = inlined_call_operand.vmem [shape: f32[2,1,1024], index: 2, kind: output, shape index: {}]
  %s3 = sld [smem:[#allocation0]]
  $region45: #{sam_loss.1} parent=0
    _
  %s5 = ssub.s32 1, %s3
  %s6 = scalar_select 0, %s5, %s3
  loop: start=0, step=1, limit=4
  $region2: #{sam_loss.1} parent=0 // loop_pre_header
    _
  $region3: #{sam_loss.1} parent=0 // loop_header
    %s8 = sphi 0, %s12
    %p9 = scmp.ge.s32.totalorder %s8, 4
    %s15 = sphi 0, %s27
    %s16 = sphi 0, %s23
    %s17 = sphi 0, %s15
    %s18 = sphi 0, %s16
    %s19 = sphi 0, %s17
    %s20 = sphi 0, %s18
    %s32 = sphi 0, %s34
    %s35 = sphi 0, %s32
    %s36 = sphi 0, %s35
    %s52 = sphi 0, %s36
    %s60 = sphi 0, %s62
    %s63 = sphi 0, %s60
    %s64 = sphi 0, %s63
    %s80 = sphi 0, %s64
    %s86 = sphi 0, %s88
    %s89 = sphi 0, %s86
    %s90 = sphi 0, %s89
    %s106 = sphi 0, %s90
  $region4: #{sam_loss.1} parent=0 // loop_header_branch
    %11 = sbr.rel (%p9) target = $region8
  $region5: #{sam_loss.1} parent=0 // loop_body
    %s13 = ssub.s32 %s8, 1
    %s14 = ssub.s32 %s8, 2
    %s21 = sadd.s32 1, %s16
    %p22 = scmp.ge.s32.totalorder %s21, 1
    %s23 = scalar_select %p22, 0, %s21
    %s24 = sadd.s32 1, %s15
    %s25 = scalar_select %p22, %s24, %s15
    %p26 = scmp.ge.s32.totalorder %s25, 2
    %s27 = scalar_select %p26, 0, %s25
    %s28 = ssub.s32 %s15, %s27
    %s29 = ssub.s32 %s16, %s23
    %s30 = sor.u32 %s28, %s29
    %p31 = scmp.eq.s32.totalorder %s30, 0
    %s33 = sadd.s32 %s32, 1
    %s34 = scalar_select %p31, %s32, %s33
    %p37 = pneg %p31
    %p38 = scmp.eq.s32.totalorder %s8, 1
    %p39 = por %p37, %p38
    %p40 = scmp.ne.s32.totalorder %s32, %s35
    %p41 = scmp.eq.s32.totalorder %s8, 0
    %p42 = por %p40, %p41
    %p43 = scmp.ne.s32.totalorder %s32, %s35
    %p44 = scmp.eq.s32.totalorder %s13, 1
    %p45 = por %p43, %p44
    %p46 = scmp.ne.s32.totalorder %s35, %s36
    %p47 = scmp.eq.s32.totalorder %s13, 0
    %p48 = por %p46, %p47
    %p49 = scmp.ne.s32.totalorder %s35, %s36
    %p50 = scmp.eq.s32.totalorder %s14, 1
    %p51 = por %p49, %p50
    %p53 = scmp.ne.s32.totalorder %s36, %s52
    %p54 = scmp.eq.s32.totalorder %s14, 0
    %p55 = por %p53, %p54
    %s56 = ssub.s32 %s15, %s27
    %s57 = ssub.s32 %s16, %s23
    %s58 = sor.u32 %s56, %s57
    %p59 = scmp.eq.s32.totalorder %s58, 0
    %s61 = sadd.s32 %s60, 1
    %s62 = scalar_select %p59, %s60, %s61
    %p65 = pneg %p59
    %p66 = scmp.eq.s32.totalorder %s8, 1
    %p67 = por %p65, %p66
    %p68 = scmp.ne.s32.totalorder %s60, %s63
    %p69 = scmp.eq.s32.totalorder %s8, 0
    %p70 = por %p68, %p69
    %p71 = scmp.ne.s32.totalorder %s60, %s63
    %p72 = scmp.eq.s32.totalorder %s13, 1
    %p73 = por %p71, %p72
    %p74 = scmp.ne.s32.totalorder %s63, %s64
    %p75 = scmp.eq.s32.totalorder %s13, 0
    %p76 = por %p74, %p75
    %p77 = scmp.ne.s32.totalorder %s63, %s64
    %p78 = scmp.eq.s32.totalorder %s14, 1
    %p79 = por %p77, %p78
    %p81 = scmp.ne.s32.totalorder %s64, %s80
    %p82 = scmp.eq.s32.totalorder %s14, 0
    %p83 = por %p81, %p82
    %s84 = ssub.s32 %s15, %s27
    %p85 = scmp.eq.s32.totalorder %s84, 0
    %s87 = sadd.s32 %s86, 1
    %s88 = scalar_select %p85, %s86, %s87
    %p91 = pneg %p85
    %p92 = scmp.eq.s32.totalorder %s8, 1
    %p93 = por %p91, %p92
    %p94 = scmp.ne.s32.totalorder %s86, %s89
    %p95 = scmp.eq.s32.totalorder %s8, 0
    %p96 = por %p94, %p95
    %p97 = scmp.ne.s32.totalorder %s86, %s89
    %p98 = scmp.eq.s32.totalorder %s13, 1
    %p99 = por %p97, %p98
    %p100 = scmp.ne.s32.totalorder %s89, %s90
    %p101 = scmp.eq.s32.totalorder %s13, 0
    %p102 = por %p100, %p101
    %p103 = scmp.ne.s32.totalorder %s89, %s90
    %p104 = scmp.eq.s32.totalorder %s14, 1
    %p105 = por %p103, %p104
    %p107 = scmp.ne.s32.totalorder %s90, %s106
    %p108 = scmp.eq.s32.totalorder %s14, 0
    %p109 = por %p107, %p108
    %p110 = scmp.le.s32.totalorder 1, %s8
    %p111 = scmp.lt.s32.totalorder %s8, 3
    %p112 = pnand %p110, %p111
    %p113 = pneg %p112
    // Predicated region
    $region9: #{sam_loss.1} parent=5 // pred_check
      _
    $region10: #{sam_loss.1} parent=5 // pred_check_branch
      %115 = sbr.rel (%p112) target = $region12
    $region11: #{sam_loss.1} parent=5 // pred_region
      %s116 = ssub.s32 %s8, 1
    $region12: #{sam_loss.1} parent=5 // pred_fallthru
      _
    %p117 = scmp.lt.s32.totalorder %s8, 2
    // Predicated region
    $region13: #{sam_loss.1} parent=5 // pred_check
      %p118 = pneg %p117
    $region14: #{sam_loss.1} parent=5 // pred_check_branch
      %120 = sbr.rel (%p118) target = $region16
    $region15: #{sam_loss.1} parent=5 // pred_region
      // Predicated region
      $region17: #{sam_loss.1} parent=15 // pred_check
        %p121 = pneg %p42
      $region18: #{sam_loss.1} parent=15 // pred_check_branch
        %123 = sbr.rel (%p121) target = $region20
      $region19: #{sam_loss.1} parent=15 // pred_region
        %s124 = smul.u32 8, %s16
        %p125 = scmp.lt.s32.totalorder %s15, 1
        %s126 = scalar_select %p125, %s15, 1
        %p127 = scmp.lt.s32.totalorder %s124, 7
        %s128 = scalar_select %p127, %s124, 7
        %s129 = smul.addr %s126, 32
        %s130 = sadd.s32 %s128, %s129
        %s131 = smul.addr %s130, 8
        %s132 = scalar_lea.vmem %s0, %s131
        %s133 = smul.u32 8, %s16
      $region20: #{sam_loss.1} parent=15 // pred_fallthru
        _
      // Predicated region
      $region21: #{sam_loss.1} parent=15 // pred_check
        %p134 = pneg %p70
      $region22: #{sam_loss.1} parent=15 // pred_check_branch
        %136 = sbr.rel (%p134) target = $region24
      $region23: #{sam_loss.1} parent=15 // pred_region
        %s137 = smul.u32 8, %s16
        %p138 = scmp.lt.s32.totalorder %s15, 1
        %s139 = scalar_select %p138, %s15, 1
        %p140 = scmp.lt.s32.totalorder %s137, 7
        %s141 = scalar_select %p140, %s137, 7
        %s142 = smul.addr %s139, 32
        %s143 = sadd.s32 %s141, %s142
        %s144 = smul.addr %s143, 8
        %s145 = scalar_lea.vmem %s1, %s144
        %s146 = smul.u32 8, %s16
      $region24: #{sam_loss.1} parent=15 // pred_fallthru
        _
    $region16: #{sam_loss.1} parent=5 // pred_fallthru
      _
    %p147 = scmp.le.s32.totalorder 1, %s8
    %p148 = scmp.lt.s32.totalorder %s8, 3
    %p149 = pnand %p147, %p148
    %p150 = pneg %p149
    // Predicated region
    $region25: #{sam_loss.1} parent=5 // pred_check
      _
    $region26: #{sam_loss.1} parent=5 // pred_check_branch
      %152 = sbr.rel (%p149) target = $region28
    $region27: #{sam_loss.1} parent=5 // pred_region
      %s153 = ssub.s32 %s8, 1
      %s154 = smul.u32 8, %s18
      %p155 = scmp.lt.s32.totalorder %s17, 1
      %s156 = scalar_select %p155, %s17, 1
      %p157 = scmp.lt.s32.totalorder %s154, 7
      %s158 = scalar_select %p157, %s154, 7
      %s159 = smul.addr %s156, 32
      %s160 = sadd.s32 %s158, %s159
      %s161 = smul.addr %s160, 8
      %s162 = scalar_lea.vmem %s0, %s161
      %p163 = pneg %p48
      %p164 = pneg %p45
      %s165 = smul.u32 8, %s18
      %p166 = scmp.lt.s32.totalorder %s17, 1
      %s167 = scalar_select %p166, %s17, 1
      %p168 = scmp.lt.s32.totalorder %s165, 7
      %s169 = scalar_select %p168, %s165, 7
      %s170 = smul.addr %s167, 32
      %s171 = sadd.s32 %s169, %s170
      %s172 = smul.addr %s171, 8
      %s173 = scalar_lea.vmem %s1, %s172
      %p174 = pneg %p76
      %p175 = pneg %p73
      %p176 = pneg %p102
      %p177 = pneg %p99
      %p178 = scmp.lt.s32.totalorder %s17, 1
      %s179 = scalar_select %p178, %s17, 1
      %s180 = smul.addr %s179, 8
      %s181 = scalar_lea.vmem %s2, %s180
      %s182 = smul.u32 8, %s18
      %p183 = scmp.lt.s32.totalorder %s17, 1
      %s184 = scalar_select %p183, %s17, 1
      %p185 = scmp.lt.s32.totalorder %s182, 7
      %s186 = scalar_select %p185, %s182, 7
      %s187 = smul.addr %s184, 32
      %s188 = sadd.s32 %s186, %s187
      %s189 = smul.addr %s188, 8
      %s190 = scalar_lea.vmem %s0, %s189
      %s191 = smul.u32 8, %s18
      %s192 = smul.u32 8, %s18
      %p193 = scmp.lt.s32.totalorder %s17, 1
      %s194 = scalar_select %p193, %s17, 1
      %p195 = scmp.lt.s32.totalorder %s192, 7
      %s196 = scalar_select %p195, %s192, 7
      %s197 = smul.addr %s194, 32
      %s198 = sadd.s32 %s196, %s197
      %s199 = smul.addr %s198, 8
      %s200 = scalar_lea.vmem %s1, %s199
      %s201 = smul.u32 8, %s18
      %p202 = scmp.lt.s32.totalorder %s17, 1
      %s203 = scalar_select %p202, %s17, 1
      %s204 = smul.addr %s203, 8
      %s205 = scalar_lea.vmem %s2, %s204
      %p206 = scmp.eq.s32.totalorder %s18, 0
      // Predicated region
      $region29: #{sam_loss.1} parent=27 // pred_check
        %p207 = pneg %p206
      $region30: #{sam_loss.1} parent=27 // pred_check_branch
        %209 = sbr.rel (%p207) target = $region32
      $region31: #{sam_loss.1} parent=27 // pred_region
        %210 = vst [vmem:[%s205] sm:$0xff] 0.0
      $region32: #{sam_loss.1} parent=27 // pred_fallthru
        _
      %v211 = vld [vmem:[%s190] sm:$0xff]
      %v212 = vld [vmem:[%s190 + $0x8] sm:$0xff]
      %v213 = vld [vmem:[%s190 + $0x10] sm:$0xff]
      %v214 = vld [vmem:[%s190 + $0x18] sm:$0xff]
      %v215 = vld [vmem:[%s190 + $0x20] sm:$0xff]
      %v216 = vld [vmem:[%s190 + $0x28] sm:$0xff]
      %v217 = vld [vmem:[%s190 + $0x30] sm:$0xff]
      %v218 = vld [vmem:[%s190 + $0x38] sm:$0xff]
      %v219 = vld [vmem:[%s190 + $0x40] sm:$0xff]
      %v220 = vld [vmem:[%s190 + $0x48] sm:$0xff]
      %v221 = vld [vmem:[%s190 + $0x50] sm:$0xff]
      %v222 = vld [vmem:[%s190 + $0x58] sm:$0xff]
      %v223 = vld [vmem:[%s190 + $0x60] sm:$0xff]
      %v224 = vld [vmem:[%s190 + $0x68] sm:$0xff]
      %v225 = vld [vmem:[%s190 + $0x70] sm:$0xff]
      %v226 = vld [vmem:[%s190 + $0x78] sm:$0xff]
      %v227 = vld [vmem:[%s190 + $0x80] sm:$0xff]
      %v228 = vld [vmem:[%s190 + $0x88] sm:$0xff]
      %v229 = vld [vmem:[%s190 + $0x90] sm:$0xff]
      %v230 = vld [vmem:[%s190 + $0x98] sm:$0xff]
      %v231 = vld [vmem:[%s190 + $0xa0] sm:$0xff]
      %v232 = vld [vmem:[%s190 + $0xa8] sm:$0xff]
      %v233 = vld [vmem:[%s190 + $0xb0] sm:$0xff]
      %v234 = vld [vmem:[%s190 + $0xb8] sm:$0xff]
      %v235 = vld [vmem:[%s190 + $0xc0] sm:$0x7f]
      %v236 = vld [vmem:[%s190 + $0xc8] sm:$0x7f]
      %v237 = vld [vmem:[%s190 + $0xd0] sm:$0x7f]
      %v238 = vld [vmem:[%s190 + $0xd8] sm:$0x7f]
      %v239 = vld [vmem:[%s190 + $0xe0] sm:$0x7f]
      %v240 = vld [vmem:[%s190 + $0xe8] sm:$0x7f]
      %v241 = vld [vmem:[%s190 + $0xf0] sm:$0x7f]
      %v242 = vld [vmem:[%s190 + $0xf8] sm:$0x7f]
      %v243 = vld [vmem:[%s200] sm:$0xff]
      %v244 = vld [vmem:[%s200 + $0x8] sm:$0xff]
      %v245 = vld [vmem:[%s200 + $0x10] sm:$0xff]
      %v246 = vld [vmem:[%s200 + $0x18] sm:$0xff]
      %v247 = vld [vmem:[%s200 + $0x20] sm:$0xff]
      %v248 = vld [vmem:[%s200 + $0x28] sm:$0xff]
      %v249 = vld [vmem:[%s200 + $0x30] sm:$0xff]
      %v250 = vld [vmem:[%s200 + $0x38] sm:$0xff]
      %v251 = vld [vmem:[%s200 + $0x40] sm:$0xff]
      %v252 = vld [vmem:[%s200 + $0x48] sm:$0xff]
      %v253 = vld [vmem:[%s200 + $0x50] sm:$0xff]
      %v254 = vld [vmem:[%s200 + $0x58] sm:$0xff]
      %v255 = vld [vmem:[%s200 + $0x60] sm:$0xff]
      %v256 = vld [vmem:[%s200 + $0x68] sm:$0xff]
      %v257 = vld [vmem:[%s200 + $0x70] sm:$0xff]
      %v258 = vld [vmem:[%s200 + $0x78] sm:$0xff]
      %v259 = vld [vmem:[%s200 + $0x80] sm:$0xff]
      %v260 = vld [vmem:[%s200 + $0x88] sm:$0xff]
      %v261 = vld [vmem:[%s200 + $0x90] sm:$0xff]
      %v262 = vld [vmem:[%s200 + $0x98] sm:$0xff]
      %v263 = vld [vmem:[%s200 + $0xa0] sm:$0xff]
      %v264 = vld [vmem:[%s200 + $0xa8] sm:$0xff]
      %v265 = vld [vmem:[%s200 + $0xb0] sm:$0xff]
      %v266 = vld [vmem:[%s200 + $0xb8] sm:$0xff]
      %v267 = vld [vmem:[%s200 + $0xc0] sm:$0x7f]
      %v268 = vld [vmem:[%s200 + $0xc8] sm:$0x7f]
      %v269 = vld [vmem:[%s200 + $0xd0] sm:$0x7f]
      %v270 = vld [vmem:[%s200 + $0xd8] sm:$0x7f]
      %v271 = vld [vmem:[%s200 + $0xe0] sm:$0x7f]
      %v272 = vld [vmem:[%s200 + $0xe8] sm:$0x7f]
      %v273 = vld [vmem:[%s200 + $0xf0] sm:$0x7f]
      %v274 = vld [vmem:[%s200 + $0xf8] sm:$0x7f]
      %v275 = vmul.f32 %v211, %v243
      %v276 = vmul.f32 %v212, %v244
      %v277 = vmul.f32 %v213, %v245
      %v278 = vmul.f32 %v214, %v246
      %v279 = vmul.f32 %v215, %v247
      %v280 = vmul.f32 %v216, %v248
      %v281 = vmul.f32 %v217, %v249
      %v282 = vmul.f32 %v218, %v250
      %v283 = vmul.f32 %v219, %v251
      %v284 = vmul.f32 %v220, %v252
      %v285 = vmul.f32 %v221, %v253
      %v286 = vmul.f32 %v222, %v254
      %v287 = vmul.f32 %v223, %v255
      %v288 = vmul.f32 %v224, %v256
      %v289 = vmul.f32 %v225, %v257
      %v290 = vmul.f32 %v226, %v258
      %v291 = vmul.f32 %v227, %v259
      %v292 = vmul.f32 %v228, %v260
      %v293 = vmul.f32 %v229, %v261
      %v294 = vmul.f32 %v230, %v262
      %v295 = vmul.f32 %v231, %v263
      %v296 = vmul.f32 %v232, %v264
      %v297 = vmul.f32 %v233, %v265
      %v298 = vmul.f32 %v234, %v266
      %v299 = vmul.f32 %v235, %v267
      %v300 = vmul.f32 %v236, %v268
      %v301 = vmul.f32 %v237, %v269
      %v302 = vmul.f32 %v238, %v270
      %v303 = vmul.f32 %v239, %v271
      %v304 = vmul.f32 %v240, %v272
      %v305 = vmul.f32 %v241, %v273
      %v306 = vmul.f32 %v242, %v274
      %v307 = vadd.f32 %v275, %v283
      %v308 = vadd.f32 %v307, %v291
      %vm309 = vcmask 1046528
      %v310 = vsel %vm309, %v299, 0.0
      %v311 = vadd.f32 %v308, %v310
      %v312 = vrot.slane %v311, 4
      %v313 = vadd.f32 %v311, %v312
      %v314 = vrot.slane %v313, 2
      %v315 = vadd.f32 %v313, %v314
      %v316 = vrot.slane %v315, 1
      %v317 = vadd.f32 %v315, %v316
      %v318 = vadd.f32 %v276, %v284
      %v319 = vadd.f32 %v318, %v292
      %v320 = vsel %vm309, %v300, 0.0
      %v321 = vadd.f32 %v319, %v320
      %v322 = vrot.slane %v321, 4
      %v323 = vadd.f32 %v321, %v322
      %v324 = vrot.slane %v323, 2
      %v325 = vadd.f32 %v323, %v324
      %v326 = vrot.slane %v325, 1
      %v327 = vadd.f32 %v325, %v326
      %v328 = vadd.f32 %v277, %v285
      %v329 = vadd.f32 %v328, %v293
      %v330 = vsel %vm309, %v301, 0.0
      %v331 = vadd.f32 %v329, %v330
      %v332 = vrot.slane %v331, 4
      %v333 = vadd.f32 %v331, %v332
      %v334 = vrot.slane %v333, 2
      %v335 = vadd.f32 %v333, %v334
      %v336 = vrot.slane %v335, 1
      %v337 = vadd.f32 %v335, %v336
      %v338 = vadd.f32 %v278, %v286
      %v339 = vadd.f32 %v338, %v294
      %v340 = vsel %vm309, %v302, 0.0
      %v341 = vadd.f32 %v339, %v340
      %v342 = vrot.slane %v341, 4
      %v343 = vadd.f32 %v341, %v342
      %v344 = vrot.slane %v343, 2
      %v345 = vadd.f32 %v343, %v344
      %v346 = vrot.slane %v345, 1
      %v347 = vadd.f32 %v345, %v346
      %v348 = vadd.f32 %v279, %v287
      %v349 = vadd.f32 %v348, %v295
      %v350 = vsel %vm309, %v303, 0.0
      %v351 = vadd.f32 %v349, %v350
      %v352 = vrot.slane %v351, 4
      %v353 = vadd.f32 %v351, %v352
      %v354 = vrot.slane %v353, 2
      %v355 = vadd.f32 %v353, %v354
      %v356 = vrot.slane %v355, 1
      %v357 = vadd.f32 %v355, %v356
      %v358 = vadd.f32 %v280, %v288
      %v359 = vadd.f32 %v358, %v296
      %v360 = vsel %vm309, %v304, 0.0
      %v361 = vadd.f32 %v359, %v360
      %v362 = vrot.slane %v361, 4
      %v363 = vadd.f32 %v361, %v362
      %v364 = vrot.slane %v363, 2
      %v365 = vadd.f32 %v363, %v364
      %v366 = vrot.slane %v365, 1
      %v367 = vadd.f32 %v365, %v366
      %v368 = vadd.f32 %v281, %v289
      %v369 = vadd.f32 %v368, %v297
      %v370 = vsel %vm309, %v305, 0.0
      %v371 = vadd.f32 %v369, %v370
      %v372 = vrot.slane %v371, 4
      %v373 = vadd.f32 %v371, %v372
      %v374 = vrot.slane %v373, 2
      %v375 = vadd.f32 %v373, %v374
      %v376 = vrot.slane %v375, 1
      %v377 = vadd.f32 %v375, %v376
      %v378 = vadd.f32 %v282, %v290
      %v379 = vadd.f32 %v378, %v298
      %v380 = vsel %vm309, %v306, 0.0
      %v381 = vadd.f32 %v379, %v380
      %v382 = vrot.slane %v381, 4
      %v383 = vadd.f32 %v381, %v382
      %v384 = vrot.slane %v383, 2
      %v385 = vadd.f32 %v383, %v384
      %v386 = vrot.slane %v385, 1
      %v387 = vadd.f32 %v385, %v386
      %v388 = vmul.f32 %v211, %v211
      %v389 = vmul.f32 %v212, %v212
      %v390 = vmul.f32 %v213, %v213
      %v391 = vmul.f32 %v214, %v214
      %v392 = vmul.f32 %v215, %v215
      %v393 = vmul.f32 %v216, %v216
      %v394 = vmul.f32 %v217, %v217
      %v395 = vmul.f32 %v218, %v218
      %v396 = vmul.f32 %v219, %v219
      %v397 = vmul.f32 %v220, %v220
      %v398 = vmul.f32 %v221, %v221
      %v399 = vmul.f32 %v222, %v222
      %v400 = vmul.f32 %v223, %v223
      %v401 = vmul.f32 %v224, %v224
      %v402 = vmul.f32 %v225, %v225
      %v403 = vmul.f32 %v226, %v226
      %v404 = vmul.f32 %v227, %v227
      %v405 = vmul.f32 %v228, %v228
      %v406 = vmul.f32 %v229, %v229
      %v407 = vmul.f32 %v230, %v230
      %v408 = vmul.f32 %v231, %v231
      %v409 = vmul.f32 %v232, %v232
      %v410 = vmul.f32 %v233, %v233
      %v411 = vmul.f32 %v234, %v234
      %v412 = vmul.f32 %v235, %v235
      %v413 = vmul.f32 %v236, %v236
      %v414 = vmul.f32 %v237, %v237
      %v415 = vmul.f32 %v238, %v238
      %v416 = vmul.f32 %v239, %v239
      %v417 = vmul.f32 %v240, %v240
      %v418 = vmul.f32 %v241, %v241
      %v419 = vmul.f32 %v242, %v242
      %v420 = vadd.f32 %v388, %v396
      %v421 = vadd.f32 %v420, %v404
      %v422 = vsel %vm309, %v412, 0.0
      %v423 = vadd.f32 %v421, %v422
      %v424 = vrot.slane %v423, 4
      %v425 = vadd.f32 %v423, %v424
      %v426 = vrot.slane %v425, 2
      %v427 = vadd.f32 %v425, %v426
      %v428 = vrot.slane %v427, 1
      %v429 = vadd.f32 %v427, %v428
      %v430 = vadd.f32 %v389, %v397
      %v431 = vadd.f32 %v430, %v405
      %v432 = vsel %vm309, %v413, 0.0
      %v433 = vadd.f32 %v431, %v432
      %v434 = vrot.slane %v433, 4
      %v435 = vadd.f32 %v433, %v434
      %v436 = vrot.slane %v435, 2
      %v437 = vadd.f32 %v435, %v436
      %v438 = vrot.slane %v437, 1
      %v439 = vadd.f32 %v437, %v438
      %v440 = vadd.f32 %v390, %v398
      %v441 = vadd.f32 %v440, %v406
      %v442 = vsel %vm309, %v414, 0.0
      %v443 = vadd.f32 %v441, %v442
      %v444 = vrot.slane %v443, 4
      %v445 = vadd.f32 %v443, %v444
      %v446 = vrot.slane %v445, 2
      %v447 = vadd.f32 %v445, %v446
      %v448 = vrot.slane %v447, 1
      %v449 = vadd.f32 %v447, %v448
      %v450 = vadd.f32 %v391, %v399
      %v451 = vadd.f32 %v450, %v407
      %v452 = vsel %vm309, %v415, 0.0
      %v453 = vadd.f32 %v451, %v452
      %v454 = vrot.slane %v453, 4
      %v455 = vadd.f32 %v453, %v454
      %v456 = vrot.slane %v455, 2
      %v457 = vadd.f32 %v455, %v456
      %v458 = vrot.slane %v457, 1
      %v459 = vadd.f32 %v457, %v458
      %v460 = vadd.f32 %v392, %v400
      %v461 = vadd.f32 %v460, %v408
      %v462 = vsel %vm309, %v416, 0.0
      %v463 = vadd.f32 %v461, %v462
      %v464 = vrot.slane %v463, 4
      %v465 = vadd.f32 %v463, %v464
      %v466 = vrot.slane %v465, 2
      %v467 = vadd.f32 %v465, %v466
      %v468 = vrot.slane %v467, 1
      %v469 = vadd.f32 %v467, %v468
      %v470 = vadd.f32 %v393, %v401
      %v471 = vadd.f32 %v470, %v409
      %v472 = vsel %vm309, %v417, 0.0
      %v473 = vadd.f32 %v471, %v472
      %v474 = vrot.slane %v473, 4
      %v475 = vadd.f32 %v473, %v474
      %v476 = vrot.slane %v475, 2
      %v477 = vadd.f32 %v475, %v476
      %v478 = vrot.slane %v477, 1
      %v479 = vadd.f32 %v477, %v478
      %v480 = vadd.f32 %v394, %v402
      %v481 = vadd.f32 %v480, %v410
      %v482 = vsel %vm309, %v418, 0.0
      %v483 = vadd.f32 %v481, %v482
      %v484 = vrot.slane %v483, 4
      %v485 = vadd.f32 %v483, %v484
      %v486 = vrot.slane %v485, 2
      %v487 = vadd.f32 %v485, %v486
      %v488 = vrot.slane %v487, 1
      %v489 = vadd.f32 %v487, %v488
      %v490 = vadd.f32 %v395, %v403
      %v491 = vadd.f32 %v490, %v411
      %v492 = vsel %vm309, %v419, 0.0
      %v493 = vadd.f32 %v491, %v492
      %v494 = vrot.slane %v493, 4
      %v495 = vadd.f32 %v493, %v494
      %v496 = vrot.slane %v495, 2
      %v497 = vadd.f32 %v495, %v496
      %v498 = vrot.slane %v497, 1
      %v499 = vadd.f32 %v497, %v498
      %v500 = vmul.f32 %v243, %v243
      %v501 = vmul.f32 %v244, %v244
      %v502 = vmul.f32 %v245, %v245
      %v503 = vmul.f32 %v246, %v246
      %v504 = vmul.f32 %v247, %v247
      %v505 = vmul.f32 %v248, %v248
      %v506 = vmul.f32 %v249, %v249
      %v507 = vmul.f32 %v250, %v250
      %v508 = vmul.f32 %v251, %v251
      %v509 = vmul.f32 %v252, %v252
      %v510 = vmul.f32 %v253, %v253
      %v511 = vmul.f32 %v254, %v254
      %v512 = vmul.f32 %v255, %v255
      %v513 = vmul.f32 %v256, %v256
      %v514 = vmul.f32 %v257, %v257
      %v515 = vmul.f32 %v258, %v258
      %v516 = vmul.f32 %v259, %v259
      %v517 = vmul.f32 %v260, %v260
      %v518 = vmul.f32 %v261, %v261
      %v519 = vmul.f32 %v262, %v262
      %v520 = vmul.f32 %v263, %v263
      %v521 = vmul.f32 %v264, %v264
      %v522 = vmul.f32 %v265, %v265
      %v523 = vmul.f32 %v266, %v266
      %v524 = vmul.f32 %v267, %v267
      %v525 = vmul.f32 %v268, %v268
      %v526 = vmul.f32 %v269, %v269
      %v527 = vmul.f32 %v270, %v270
      %v528 = vmul.f32 %v271, %v271
      %v529 = vmul.f32 %v272, %v272
      %v530 = vmul.f32 %v273, %v273
      %v531 = vmul.f32 %v274, %v274
      %v532 = vadd.f32 %v500, %v508
      %v533 = vadd.f32 %v532, %v516
      %v534 = vsel %vm309, %v524, 0.0
      %v535 = vadd.f32 %v533, %v534
      %v536 = vrot.slane %v535, 4
      %v537 = vadd.f32 %v535, %v536
      %v538 = vrot.slane %v537, 2
      %v539 = vadd.f32 %v537, %v538
      %v540 = vrot.slane %v539, 1
      %v541 = vadd.f32 %v539, %v540
      %v542 = vadd.f32 %v501, %v509
      %v543 = vadd.f32 %v542, %v517
      %v544 = vsel %vm309, %v525, 0.0
      %v545 = vadd.f32 %v543, %v544
      %v546 = vrot.slane %v545, 4
      %v547 = vadd.f32 %v545, %v546
      %v548 = vrot.slane %v547, 2
      %v549 = vadd.f32 %v547, %v548
      %v550 = vrot.slane %v549, 1
      %v551 = vadd.f32 %v549, %v550
      %v552 = vadd.f32 %v502, %v510
      %v553 = vadd.f32 %v552, %v518
      %v554 = vsel %vm309, %v526, 0.0
      %v555 = vadd.f32 %v553, %v554
      %v556 = vrot.slane %v555, 4
      %v557 = vadd.f32 %v555, %v556
      %v558 = vrot.slane %v557, 2
      %v559 = vadd.f32 %v557, %v558
      %v560 = vrot.slane %v559, 1
      %v561 = vadd.f32 %v559, %v560
      %v562 = vadd.f32 %v503, %v511
      %v563 = vadd.f32 %v562, %v519
      %v564 = vsel %vm309, %v527, 0.0
      %v565 = vadd.f32 %v563, %v564
      %v566 = vrot.slane %v565, 4
      %v567 = vadd.f32 %v565, %v566
      %v568 = vrot.slane %v567, 2
      %v569 = vadd.f32 %v567, %v568
      %v570 = vrot.slane %v569, 1
      %v571 = vadd.f32 %v569, %v570
      %v572 = vadd.f32 %v504, %v512
      %v573 = vadd.f32 %v572, %v520
      %v574 = vsel %vm309, %v528, 0.0
      %v575 = vadd.f32 %v573, %v574
      %v576 = vrot.slane %v575, 4
      %v577 = vadd.f32 %v575, %v576
      %v578 = vrot.slane %v577, 2
      %v579 = vadd.f32 %v577, %v578
      %v580 = vrot.slane %v579, 1
      %v581 = vadd.f32 %v579, %v580
      %v582 = vadd.f32 %v505, %v513
      %v583 = vadd.f32 %v582, %v521
      %v584 = vsel %vm309, %v529, 0.0
      %v585 = vadd.f32 %v583, %v584
      %v586 = vrot.slane %v585, 4
      %v587 = vadd.f32 %v585, %v586
      %v588 = vrot.slane %v587, 2
      %v589 = vadd.f32 %v587, %v588
      %v590 = vrot.slane %v589, 1
      %v591 = vadd.f32 %v589, %v590
      %v592 = vadd.f32 %v506, %v514
      %v593 = vadd.f32 %v592, %v522
      %v594 = vsel %vm309, %v530, 0.0
      %v595 = vadd.f32 %v593, %v594
      %v596 = vrot.slane %v595, 4
      %v597 = vadd.f32 %v595, %v596
      %v598 = vrot.slane %v597, 2
      %v599 = vadd.f32 %v597, %v598
      %v600 = vrot.slane %v599, 1
      %v601 = vadd.f32 %v599, %v600
      %v602 = vadd.f32 %v507, %v515
      %v603 = vadd.f32 %v602, %v523
      %v604 = vsel %vm309, %v531, 0.0
      %v605 = vadd.f32 %v603, %v604
      %v606 = vrot.slane %v605, 4
      %v607 = vadd.f32 %v605, %v606
      %v608 = vrot.slane %v607, 2
      %v609 = vadd.f32 %v607, %v608
      %v610 = vrot.slane %v609, 1
      %v611 = vadd.f32 %v609, %v610
      %v612 = vrsqrt.pop %v429
      %v613 = vmul.f32 %v429, %v612
      %vm614 = vcmp.eq.f32.partialorder %v429, inf
      %v615 = vsel %vm614, %v429, %v613
      %vm616 = vcmp.eq.f32.partialorder %v429, 0.0
      %v617 = vand.u32 %v429, 2147483648
      %v618 = vsel %vm616, %v617, %v615
      %v619 = vrsqrt.pop %v439
      %v620 = vmul.f32 %v439, %v619
      %vm621 = vcmp.eq.f32.partialorder %v439, inf
      %v622 = vsel %vm621, %v439, %v620
      %vm623 = vcmp.eq.f32.partialorder %v439, 0.0
      %v624 = vand.u32 %v439, 2147483648
      %v625 = vsel %vm623, %v624, %v622
      %v626 = vrsqrt.pop %v449
      %v627 = vmul.f32 %v449, %v626
      %vm628 = vcmp.eq.f32.partialorder %v449, inf
      %v629 = vsel %vm628, %v449, %v627
      %vm630 = vcmp.eq.f32.partialorder %v449, 0.0
      %v631 = vand.u32 %v449, 2147483648
      %v632 = vsel %vm630, %v631, %v629
      %v633 = vrsqrt.pop %v459
      %v634 = vmul.f32 %v459, %v633
      %vm635 = vcmp.eq.f32.partialorder %v459, inf
      %v636 = vsel %vm635, %v459, %v634
      %vm637 = vcmp.eq.f32.partialorder %v459, 0.0
      %v638 = vand.u32 %v459, 2147483648
      %v639 = vsel %vm637, %v638, %v636
      %v640 = vrsqrt.pop %v469
      %v641 = vmul.f32 %v469, %v640
      %vm642 = vcmp.eq.f32.partialorder %v469, inf
      %v643 = vsel %vm642, %v469, %v641
      %vm644 = vcmp.eq.f32.partialorder %v469, 0.0
      %v645 = vand.u32 %v469, 2147483648
      %v646 = vsel %vm644, %v645, %v643
      %v647 = vrsqrt.pop %v479
      %v648 = vmul.f32 %v479, %v647
      %vm649 = vcmp.eq.f32.partialorder %v479, inf
      %v650 = vsel %vm649, %v479, %v648
      %vm651 = vcmp.eq.f32.partialorder %v479, 0.0
      %v652 = vand.u32 %v479, 2147483648
      %v653 = vsel %vm651, %v652, %v650
      %v654 = vrsqrt.pop %v489
      %v655 = vmul.f32 %v489, %v654
      %vm656 = vcmp.eq.f32.partialorder %v489, inf
      %v657 = vsel %vm656, %v489, %v655
      %vm658 = vcmp.eq.f32.partialorder %v489, 0.0
      %v659 = vand.u32 %v489, 2147483648
      %v660 = vsel %vm658, %v659, %v657
      %v661 = vrsqrt.pop %v499
      %v662 = vmul.f32 %v499, %v661
      %vm663 = vcmp.eq.f32.partialorder %v499, inf
      %v664 = vsel %vm663, %v499, %v662
      %vm665 = vcmp.eq.f32.partialorder %v499, 0.0
      %v666 = vand.u32 %v499, 2147483648
      %v667 = vsel %vm665, %v666, %v664
      %v668 = vrsqrt.pop %v541
      %v669 = vmul.f32 %v541, %v668
      %vm670 = vcmp.eq.f32.partialorder %v541, inf
      %v671 = vsel %vm670, %v541, %v669
      %vm672 = vcmp.eq.f32.partialorder %v541, 0.0
      %v673 = vand.u32 %v541, 2147483648
      %v674 = vsel %vm672, %v673, %v671
      %v675 = vrsqrt.pop %v551
      %v676 = vmul.f32 %v551, %v675
      %vm677 = vcmp.eq.f32.partialorder %v551, inf
      %v678 = vsel %vm677, %v551, %v676
      %vm679 = vcmp.eq.f32.partialorder %v551, 0.0
      %v680 = vand.u32 %v551, 2147483648
      %v681 = vsel %vm679, %v680, %v678
      %v682 = vrsqrt.pop %v561
      %v683 = vmul.f32 %v561, %v682
      %vm684 = vcmp.eq.f32.partialorder %v561, inf
      %v685 = vsel %vm684, %v561, %v683
      %vm686 = vcmp.eq.f32.partialorder %v561, 0.0
      %v687 = vand.u32 %v561, 2147483648
      %v688 = vsel %vm686, %v687, %v685
      %v689 = vrsqrt.pop %v571
      %v690 = vmul.f32 %v571, %v689
      %vm691 = vcmp.eq.f32.partialorder %v571, inf
      %v692 = vsel %vm691, %v571, %v690
      %vm693 = vcmp.eq.f32.partialorder %v571, 0.0
      %v694 = vand.u32 %v571, 2147483648
      %v695 = vsel %vm693, %v694, %v692
      %v696 = vrsqrt.pop %v581
      %v697 = vmul.f32 %v581, %v696
      %vm698 = vcmp.eq.f32.partialorder %v581, inf
      %v699 = vsel %vm698, %v581, %v697
      %vm700 = vcmp.eq.f32.partialorder %v581, 0.0
      %v701 = vand.u32 %v581, 2147483648
      %v702 = vsel %vm700, %v701, %v699
      %v703 = vrsqrt.pop %v591
      %v704 = vmul.f32 %v591, %v703
      %vm705 = vcmp.eq.f32.partialorder %v591, inf
      %v706 = vsel %vm705, %v591, %v704
      %vm707 = vcmp.eq.f32.partialorder %v591, 0.0
      %v708 = vand.u32 %v591, 2147483648
      %v709 = vsel %vm707, %v708, %v706
      %v710 = vrsqrt.pop %v601
      %v711 = vmul.f32 %v601, %v710
      %vm712 = vcmp.eq.f32.partialorder %v601, inf
      %v713 = vsel %vm712, %v601, %v711
      %vm714 = vcmp.eq.f32.partialorder %v601, 0.0
      %v715 = vand.u32 %v601, 2147483648
      %v716 = vsel %vm714, %v715, %v713
      %v717 = vrsqrt.pop %v611
      %v718 = vmul.f32 %v611, %v717
      %vm719 = vcmp.eq.f32.partialorder %v611, inf
      %v720 = vsel %vm719, %v611, %v718
      %vm721 = vcmp.eq.f32.partialorder %v611, 0.0
      %v722 = vand.u32 %v611, 2147483648
      %v723 = vsel %vm721, %v722, %v720
      %v724 = vmul.f32 %v618, %v674
      %v725 = vmul.f32 %v625, %v681
      %v726 = vmul.f32 %v632, %v688
      %v727 = vmul.f32 %v639, %v695
      %v728 = vmul.f32 %v646, %v702
      %v729 = vmul.f32 %v653, %v709
      %v730 = vmul.f32 %v660, %v716
      %v731 = vmul.f32 %v667, %v723
      %v732 = vrcp.pop %v724
      %v733 = vmul.f32 %v317, %v732
      %v734 = vrcp.pop %v725
      %v735 = vmul.f32 %v327, %v734
      %v736 = vrcp.pop %v726
      %v737 = vmul.f32 %v337, %v736
      %v738 = vrcp.pop %v727
      %v739 = vmul.f32 %v347, %v738
      %v740 = vrcp.pop %v728
      %v741 = vmul.f32 %v357, %v740
      %v742 = vrcp.pop %v729
      %v743 = vmul.f32 %v367, %v742
      %v744 = vrcp.pop %v730
      %v745 = vmul.f32 %v377, %v744
      %v746 = vrcp.pop %v731
      %v747 = vmul.f32 %v387, %v746
      %v748 = vmax.f32 %v733, -1.0
      %v749 = vmax.f32 %v735, -1.0
      %v750 = vmax.f32 %v737, -1.0
      %v751 = vmax.f32 %v739, -1.0
      %v752 = vmax.f32 %v741, -1.0
      %v753 = vmax.f32 %v743, -1.0
      %v754 = vmax.f32 %v745, -1.0
      %v755 = vmax.f32 %v747, -1.0
      %v756 = vmin.f32 %v748, 1.0
      %v757 = vmin.f32 %v749, 1.0
      %v758 = vmin.f32 %v750, 1.0
      %v759 = vmin.f32 %v751, 1.0
      %v760 = vmin.f32 %v752, 1.0
      %v761 = vmin.f32 %v753, 1.0
      %v762 = vmin.f32 %v754, 1.0
      %v763 = vmin.f32 %v755, 1.0
      %v764 = vand.u32 2147483647, %v756
      %v765 = vand.u32 2147483647, %v757
      %v766 = vand.u32 2147483647, %v758
      %v767 = vand.u32 2147483647, %v759
      %v768 = vand.u32 2147483647, %v760
      %v769 = vand.u32 2147483647, %v761
      %v770 = vand.u32 2147483647, %v762
      %v771 = vand.u32 2147483647, %v763
      %vm772 = vcmp.gt.f32.partialorder %v764, 0.5
      %vm773 = vcmp.gt.f32.partialorder %v765, 0.5
      %vm774 = vcmp.gt.f32.partialorder %v766, 0.5
      %vm775 = vcmp.gt.f32.partialorder %v767, 0.5
      %vm776 = vcmp.gt.f32.partialorder %v768, 0.5
      %vm777 = vcmp.gt.f32.partialorder %v769, 0.5
      %vm778 = vcmp.gt.f32.partialorder %v770, 0.5
      %vm779 = vcmp.gt.f32.partialorder %v771, 0.5
      %v780 = vsub.f32 1.0, %v764
      %v781 = vsub.f32 1.0, %v765
      %v782 = vsub.f32 1.0, %v766
      %v783 = vsub.f32 1.0, %v767
      %v784 = vsub.f32 1.0, %v768
      %v785 = vsub.f32 1.0, %v769
      %v786 = vsub.f32 1.0, %v770
      %v787 = vsub.f32 1.0, %v771
      %v788 = vmul.f32 %v780, 0.5
      %v789 = vmul.f32 %v781, 0.5
      %v790 = vmul.f32 %v782, 0.5
      %v791 = vmul.f32 %v783, 0.5
      %v792 = vmul.f32 %v784, 0.5
      %v793 = vmul.f32 %v785, 0.5
      %v794 = vmul.f32 %v786, 0.5
      %v795 = vmul.f32 %v787, 0.5
      %v796 = vrsqrt.pop %v788
      %v797 = vmul.f32 %v788, %v796
      %vm798 = vcmp.eq.f32.partialorder %v788, inf
      %v799 = vsel %vm798, %v788, %v797
      %vm800 = vcmp.eq.f32.partialorder %v788, 0.0
      %v801 = vand.u32 %v788, 2147483648
      %v802 = vsel %vm800, %v801, %v799
      %v803 = vrsqrt.pop %v789
      %v804 = vmul.f32 %v789, %v803
      %vm805 = vcmp.eq.f32.partialorder %v789, inf
      %v806 = vsel %vm805, %v789, %v804
      %vm807 = vcmp.eq.f32.partialorder %v789, 0.0
      %v808 = vand.u32 %v789, 2147483648
      %v809 = vsel %vm807, %v808, %v806
      %v810 = vrsqrt.pop %v790
      %v811 = vmul.f32 %v790, %v810
      %vm812 = vcmp.eq.f32.partialorder %v790, inf
      %v813 = vsel %vm812, %v790, %v811
      %vm814 = vcmp.eq.f32.partialorder %v790, 0.0
      %v815 = vand.u32 %v790, 2147483648
      %v816 = vsel %vm814, %v815, %v813
      %v817 = vrsqrt.pop %v791
      %v818 = vmul.f32 %v791, %v817
      %vm819 = vcmp.eq.f32.partialorder %v791, inf
      %v820 = vsel %vm819, %v791, %v818
      %vm821 = vcmp.eq.f32.partialorder %v791, 0.0
      %v822 = vand.u32 %v791, 2147483648
      %v823 = vsel %vm821, %v822, %v820
      %v824 = vrsqrt.pop %v792
      %v825 = vmul.f32 %v792, %v824
      %vm826 = vcmp.eq.f32.partialorder %v792, inf
      %v827 = vsel %vm826, %v792, %v825
      %vm828 = vcmp.eq.f32.partialorder %v792, 0.0
      %v829 = vand.u32 %v792, 2147483648
      %v830 = vsel %vm828, %v829, %v827
      %v831 = vrsqrt.pop %v793
      %v832 = vmul.f32 %v793, %v831
      %vm833 = vcmp.eq.f32.partialorder %v793, inf
      %v834 = vsel %vm833, %v793, %v832
      %vm835 = vcmp.eq.f32.partialorder %v793, 0.0
      %v836 = vand.u32 %v793, 2147483648
      %v837 = vsel %vm835, %v836, %v834
      %v838 = vrsqrt.pop %v794
      %v839 = vmul.f32 %v794, %v838
      %vm840 = vcmp.eq.f32.partialorder %v794, inf
      %v841 = vsel %vm840, %v794, %v839
      %vm842 = vcmp.eq.f32.partialorder %v794, 0.0
      %v843 = vand.u32 %v794, 2147483648
      %v844 = vsel %vm842, %v843, %v841
      %v845 = vrsqrt.pop %v795
      %v846 = vmul.f32 %v795, %v845
      %vm847 = vcmp.eq.f32.partialorder %v795, inf
      %v848 = vsel %vm847, %v795, %v846
      %vm849 = vcmp.eq.f32.partialorder %v795, 0.0
      %v850 = vand.u32 %v795, 2147483648
      %v851 = vsel %vm849, %v850, %v848
      %v852 = vmul.f32 %v764, %v764
      %v853 = vmul.f32 %v765, %v765
      %v854 = vmul.f32 %v766, %v766
      %v855 = vmul.f32 %v767, %v767
      %v856 = vmul.f32 %v768, %v768
      %v857 = vmul.f32 %v769, %v769
      %v858 = vmul.f32 %v770, %v770
      %v859 = vmul.f32 %v771, %v771
      %v860 = vsel %vm772, %v788, %v852
      %v861 = vsel %vm773, %v789, %v853
      %v862 = vsel %vm774, %v790, %v854
      %v863 = vsel %vm775, %v791, %v855
      %v864 = vsel %vm776, %v792, %v856
      %v865 = vsel %vm777, %v793, %v857
      %v866 = vsel %vm778, %v794, %v858
      %v867 = vsel %vm779, %v795, %v859
      %v868 = vsel %vm772, %v802, %v764
      %v869 = vsel %vm773, %v809, %v765
      %v870 = vsel %vm774, %v816, %v766
      %v871 = vsel %vm775, %v823, %v767
      %v872 = vsel %vm776, %v830, %v768
      %v873 = vsel %vm777, %v837, %v769
      %v874 = vsel %vm778, %v844, %v770
      %v875 = vsel %vm779, %v851, %v771
      %v876 = vmul.f32 %v860, 0.0421632
      %v877 = vmul.f32 %v861, 0.0421632
      %v878 = vmul.f32 %v862, 0.0421632
      %v879 = vmul.f32 %v863, 0.0421632
      %v880 = vmul.f32 %v864, 0.0421632
      %v881 = vmul.f32 %v865, 0.0421632
      %v882 = vmul.f32 %v866, 0.0421632
      %v883 = vmul.f32 %v867, 0.0421632
      %v884 = vadd.f32 %v876, 0.024181312
      %v885 = vadd.f32 %v877, 0.024181312
      %v886 = vadd.f32 %v878, 0.024181312
      %v887 = vadd.f32 %v879, 0.024181312
      %v888 = vadd.f32 %v880, 0.024181312
      %v889 = vadd.f32 %v881, 0.024181312
      %v890 = vadd.f32 %v882, 0.024181312
      %v891 = vadd.f32 %v883, 0.024181312
      %v892 = vmul.f32 %v884, %v860
      %v893 = vmul.f32 %v885, %v861
      %v894 = vmul.f32 %v886, %v862
      %v895 = vmul.f32 %v887, %v863
      %v896 = vmul.f32 %v888, %v864
      %v897 = vmul.f32 %v889, %v865
      %v898 = vmul.f32 %v890, %v866
      %v899 = vmul.f32 %v891, %v867
      %v900 = vadd.f32 %v892, 0.045470025
      %v901 = vadd.f32 %v893, 0.045470025
      %v902 = vadd.f32 %v894, 0.045470025
      %v903 = vadd.f32 %v895, 0.045470025
      %v904 = vadd.f32 %v896, 0.045470025
      %v905 = vadd.f32 %v897, 0.045470025
      %v906 = vadd.f32 %v898, 0.045470025
      %v907 = vadd.f32 %v899, 0.045470025
      %v908 = vmul.f32 %v900, %v860
      %v909 = vmul.f32 %v901, %v861
      %v910 = vmul.f32 %v902, %v862
      %v911 = vmul.f32 %v903, %v863
      %v912 = vmul.f32 %v904, %v864
      %v913 = vmul.f32 %v905, %v865
      %v914 = vmul.f32 %v906, %v866
      %v915 = vmul.f32 %v907, %v867
      %v916 = vadd.f32 %v908, 0.074953005
      %v917 = vadd.f32 %v909, 0.074953005
      %v918 = vadd.f32 %v910, 0.074953005
      %v919 = vadd.f32 %v911, 0.074953005
      %v920 = vadd.f32 %v912, 0.074953005
      %v921 = vadd.f32 %v913, 0.074953005
      %v922 = vadd.f32 %v914, 0.074953005
      %v923 = vadd.f32 %v915, 0.074953005
      %v924 = vmul.f32 %v916, %v860
      %v925 = vmul.f32 %v917, %v861
      %v926 = vmul.f32 %v918, %v862
      %v927 = vmul.f32 %v919, %v863
      %v928 = vmul.f32 %v920, %v864
      %v929 = vmul.f32 %v921, %v865
      %v930 = vmul.f32 %v922, %v866
      %v931 = vmul.f32 %v923, %v867
      %v932 = vadd.f32 %v924, 0.16666752
      %v933 = vadd.f32 %v925, 0.16666752
      %v934 = vadd.f32 %v926, 0.16666752
      %v935 = vadd.f32 %v927, 0.16666752
      %v936 = vadd.f32 %v928, 0.16666752
      %v937 = vadd.f32 %v929, 0.16666752
      %v938 = vadd.f32 %v930, 0.16666752
      %v939 = vadd.f32 %v931, 0.16666752
      %v940 = vmul.f32 %v868, %v860
      %v941 = vmul.f32 %v869, %v861
      %v942 = vmul.f32 %v870, %v862
      %v943 = vmul.f32 %v871, %v863
      %v944 = vmul.f32 %v872, %v864
      %v945 = vmul.f32 %v873, %v865
      %v946 = vmul.f32 %v874, %v866
      %v947 = vmul.f32 %v875, %v867
      %v948 = vmul.f32 %v940, %v932
      %v949 = vmul.f32 %v941, %v933
      %v950 = vmul.f32 %v942, %v934
      %v951 = vmul.f32 %v943, %v935
      %v952 = vmul.f32 %v944, %v936
      %v953 = vmul.f32 %v945, %v937
      %v954 = vmul.f32 %v946, %v938
      %v955 = vmul.f32 %v947, %v939
      %v956 = vadd.f32 %v868, %v948
      %v957 = vadd.f32 %v869, %v949
      %v958 = vadd.f32 %v870, %v950
      %v959 = vadd.f32 %v871, %v951
      %v960 = vadd.f32 %v872, %v952
      %v961 = vadd.f32 %v873, %v953
      %v962 = vadd.f32 %v874, %v954
      %v963 = vadd.f32 %v875, %v955
      %v964 = vmul.f32 %v956, 2.0
      %v965 = vmul.f32 %v957, 2.0
      %v966 = vmul.f32 %v958, 2.0
      %v967 = vmul.f32 %v959, 2.0
      %v968 = vmul.f32 %v960, 2.0
      %v969 = vmul.f32 %v961, 2.0
      %v970 = vmul.f32 %v962, 2.0
      %v971 = vmul.f32 %v963, 2.0
      %v972 = vsub.f32 1.5707964, %v956
      %v973 = vsub.f32 1.5707964, %v957
      %v974 = vsub.f32 1.5707964, %v958
      %v975 = vsub.f32 1.5707964, %v959
      %v976 = vsub.f32 1.5707964, %v960
      %v977 = vsub.f32 1.5707964, %v961
      %v978 = vsub.f32 1.5707964, %v962
      %v979 = vsub.f32 1.5707964, %v963
      %v980 = vsel %vm772, %v964, %v972
      %v981 = vsel %vm773, %v965, %v973
      %v982 = vsel %vm774, %v966, %v974
      %v983 = vsel %vm775, %v967, %v975
      %v984 = vsel %vm776, %v968, %v976
      %v985 = vsel %vm777, %v969, %v977
      %v986 = vsel %vm778, %v970, %v978
      %v987 = vsel %vm779, %v971, %v979
      %vm988 = vcmp.lt.f32.partialorder %v756, 0.0
      %vm989 = vcmp.lt.f32.partialorder %v757, 0.0
      %vm990 = vcmp.lt.f32.partialorder %v758, 0.0
      %vm991 = vcmp.lt.f32.partialorder %v759, 0.0
      %vm992 = vcmp.lt.f32.partialorder %v760, 0.0
      %vm993 = vcmp.lt.f32.partialorder %v761, 0.0
      %vm994 = vcmp.lt.f32.partialorder %v762, 0.0
      %vm995 = vcmp.lt.f32.partialorder %v763, 0.0
      %v996 = vsub.f32 3.1415927, %v980
      %v997 = vsub.f32 3.1415927, %v981
      %v998 = vsub.f32 3.1415927, %v982
      %v999 = vsub.f32 3.1415927, %v983
      %v1000 = vsub.f32 3.1415927, %v984
      %v1001 = vsub.f32 3.1415927, %v985
      %v1002 = vsub.f32 3.1415927, %v986
      %v1003 = vsub.f32 3.1415927, %v987
      %v1004 = vsel %vm988, %v996, %v980
      %v1005 = vsel %vm989, %v997, %v981
      %v1006 = vsel %vm990, %v998, %v982
      %v1007 = vsel %vm991, %v999, %v983
      %v1008 = vsel %vm992, %v1000, %v984
      %v1009 = vsel %vm993, %v1001, %v985
      %v1010 = vsel %vm994, %v1002, %v986
      %v1011 = vsel %vm995, %v1003, %v987
      %s1012 = smul.u32 %s18, 1024
      %v1013 = vlaneseq
      %v1014 = vand.u32 %v1013, 127
      %v1015 = vadd.s32 %v1014, 128
      %v1016 = vadd.s32 %v1014, 256
      %v1017 = vadd.s32 %v1014, 384
      %v1018 = vadd.s32 %v1014, 512
      %v1019 = vadd.s32 %v1014, 640
      %v1020 = vadd.s32 %v1014, 768
      %v1021 = vadd.s32 %v1014, 896
      %v1022 = vstv %s1012
      %v1023 = vadd.s32 %v1022, %v1014
      %v1024 = vadd.s32 %v1022, %v1015
      %v1025 = vadd.s32 %v1022, %v1016
      %v1026 = vadd.s32 %v1022, %v1017
      %v1027 = vadd.s32 %v1022, %v1018
      %v1028 = vadd.s32 %v1022, %v1019
      %v1029 = vadd.s32 %v1022, %v1020
      %v1030 = vadd.s32 %v1022, %v1021
      %vm1031 = vcmp.lt.s32.totalorder %v1023, 1024
      %vm1032 = vcmp.lt.s32.totalorder %v1024, 1024
      %vm1033 = vcmp.lt.s32.totalorder %v1025, 1024
      %vm1034 = vcmp.lt.s32.totalorder %v1026, 1024
      %vm1035 = vcmp.lt.s32.totalorder %v1027, 1024
      %vm1036 = vcmp.lt.s32.totalorder %v1028, 1024
      %vm1037 = vcmp.lt.s32.totalorder %v1029, 1024
      %vm1038 = vcmp.lt.s32.totalorder %v1030, 1024
      %v1039 = vsel %vm1031, %v1004, 0.0
      %v1040 = vsel %vm1032, %v1005, 0.0
      %v1041 = vsel %vm1033, %v1006, 0.0
      %v1042 = vsel %vm1034, %v1007, 0.0
      %v1043 = vsel %vm1035, %v1008, 0.0
      %v1044 = vsel %vm1036, %v1009, 0.0
      %v1045 = vsel %vm1037, %v1010, 0.0
      %v1046 = vsel %vm1038, %v1011, 0.0
      %v1047 = vld [vmem:[%s205] sm:$0xff]
      %v1056 = vcombine.low %v1039, %v1040
      %v1057 = vcombine.low %v1041, %v1042
      %v1058 = vcombine.low %v1043, %v1044
      %v1059 = vcombine.low %v1045, %v1046
      %v1061 = vunpack.c.l.s4 1966171168
      %v1062 = vunpack.c.0.s8 %v1061
      %v1063 = vlaneseq
      %v1064 = vshrl.u32 %v1063, 7
      %v1065 = vsub.s32 %v1062, %v1064
      %v1066 = vrot.slane %v1056, %v1065
      %v1068 = vunpack.c.l.s4 1966171168
      %v1069 = vunpack.c.0.s8 %v1068
      %v1070 = vlaneseq
      %v1071 = vshrl.u32 %v1070, 7
      %v1072 = vsub.s32 %v1069, %v1071
      %v1073 = vrot.slane %v1057, %v1072
      %v1075 = vunpack.c.l.s4 1966171168
      %v1076 = vunpack.c.0.s8 %v1075
      %v1077 = vlaneseq
      %v1078 = vshrl.u32 %v1077, 7
      %v1079 = vsub.s32 %v1076, %v1078
      %v1080 = vrot.slane %v1058, %v1079
      %v1082 = vunpack.c.l.s4 1966171168
      %v1083 = vunpack.c.0.s8 %v1082
      %v1084 = vlaneseq
      %v1085 = vshrl.u32 %v1084, 7
      %v1086 = vsub.s32 %v1083, %v1085
      %v1087 = vrot.slane %v1059, %v1086
      %v1088 = vcombine.low %v1066, %v1073
      %v1089 = vcombine.low %v1080, %v1087
      %v1091 = vunpack.c.l.s4 1966171168
      %v1092 = vunpack.c.0.s8 %v1091
      %v1093 = vlaneseq
      %v1094 = vshrl.u32 %v1093, 7
      %v1095 = vsub.s32 %v1092, %v1094
      %v1096 = vrot.slane %v1088, %v1095
      %v1098 = vunpack.c.l.s4 1966171168
      %v1099 = vunpack.c.0.s8 %v1098
      %v1100 = vlaneseq
      %v1101 = vshrl.u32 %v1100, 7
      %v1102 = vsub.s32 %v1099, %v1101
      %v1103 = vrot.slane %v1089, %v1102
      %v1104 = vcombine.low %v1096, %v1103
      %v1106 = vadd.f32 %v1047, %v1104
      %1107 = vst [vmem:[%s205] sm:$0xff] %v1106
      %p1108 = scmp.lt.s32.totalorder %s17, 1
      %s1109 = scalar_select %p1108, %s17, 1
      %s1110 = smul.addr %s1109, 8
      %s1111 = scalar_lea.vmem %s2, %s1110
      // Predicated region
      $region33: #{sam_loss.1} parent=27 // pred_check
        %p1112 = pneg %p99
      $region34: #{sam_loss.1} parent=27 // pred_check_branch
        %1114 = sbr.rel (%p1112) target = $region36
      $region35: #{sam_loss.1} parent=27 // pred_region
        _
      $region36: #{sam_loss.1} parent=27 // pred_fallthru
        _
    $region28: #{sam_loss.1} parent=5 // pred_fallthru
      _
    %p1115 = scmp.le.s32.totalorder 2, %s8
    // Predicated region
    $region37: #{sam_loss.1} parent=5 // pred_check
      %p1116 = pneg %p1115
    $region38: #{sam_loss.1} parent=5 // pred_check_branch
      %1118 = sbr.rel (%p1116) target = $region40
    $region39: #{sam_loss.1} parent=5 // pred_region
      %s1119 = ssub.s32 %s8, 2
      // Predicated region
      $region41: #{sam_loss.1} parent=39 // pred_check
        %p1120 = pneg %p105
      $region42: #{sam_loss.1} parent=39 // pred_check_branch
        %1122 = sbr.rel (%p1120) target = $region44
      $region43: #{sam_loss.1} parent=39 // pred_region
        %p1123 = scmp.lt.s32.totalorder %s19, 1
        %s1124 = scalar_select %p1123, %s19, 1
        %s1125 = smul.addr %s1124, 8
        %s1126 = scalar_lea.vmem %s2, %s1125
      $region44: #{sam_loss.1} parent=39 // pred_fallthru
        _
    $region40: #{sam_loss.1} parent=5 // pred_fallthru
      _
  $region6: #{sam_loss.1} parent=0 // loop_footer
    %s12 = sadd.s32 1, %s8
  $region7: #{sam_loss.1} parent=0 // loop_footer_branch
    %7 = sbr.rel target = $region3
  $region8: #{sam_loss.1} parent=0 // loop_exit
    _

</llo_original>
